<compile_context>
chip_gen: v5e
topology: v5e:2x2
jax: 0.10.0
libtpu: 0.0.40
codegen_flags: <defaults>
</compile_context>

<pallas_src>
import math

import jax
import jax.numpy as jnp
from jax import lax
from jax.experimental import pallas as pl

# ----------------------------- model config ---------------------------------
EMBED_SIZE = 32      # embed_size
N_HEADS = 4          # n_heads
SUMMARY_TOKENS = 4   # summary_tokens
SEQ_LEN = 8          # key/value sequence length
BATCH = 2
HEAD_DIM = EMBED_SIZE // N_HEADS

_BT = BATCH * SEQ_LEN                    # 16 flattened key/value rows
_G = BATCH * N_HEADS * SUMMARY_TOKENS    # 32 flattened (batch, head, summary) query rows
_OUT_ROWS = BATCH * SUMMARY_TOKENS       # 8 output rows
_PAD_ROWS = 24                           # 20 valid rows -> pad to 24 (8-sublane aligned)


# ------------------------------ Pallas kernel --------------------------------
def mha_kernel(inp_ref, win_ref, wout_ref, const_ref, o_ref):
    """Whole-batch cross-attention in one invocation (grid=(1,))."""
    E, D, S = EMBED_SIZE, HEAD_DIM, SUMMARY_TOKENS
    BT, G = _BT, _G

    # parameters (bias packed as the last row of each pre-transposed weight)
    w_in_t = win_ref[0:E, :]           # (E, 3E)
    b_in = win_ref[E:E + 1, :]         # (1, 3E)
    w_out_t = wout_ref[0:E, :]         # (E, E)
    b_out = wout_ref[E:E + 1, :]       # (1, E)

    # wrapper-precomputed constants (one packed (2G + B*S, E) array)
    head_mask = const_ref[0:G, :]                          # (G, E)
    batch_bias = const_ref[G:2 * G, 0:BT]                  # (G, BT), 0 / -1e9
    fold = const_ref[2 * G:2 * G + BATCH * S, :]           # (B*S, G)

    # ---- fused QKV projection: one MXU call over the padded [x ; summary] slab
    proj = jnp.dot(inp_ref[...], w_in_t,
                   preferred_element_type=jnp.float32) + b_in          # (24, 3E)

    k = proj[0:BT, E:2 * E]                                             # (BT, E)
    v = proj[0:BT, 2 * E:3 * E]                                         # (BT, E)
    q = proj[BT:BT + S, 0:E] * (1.0 / math.sqrt(D))                     # (S, E), pre-scaled

    # queries for every (batch, head, summary) row; mask keeps only that head's cols
    q_all = jnp.tile(q, (BATCH * N_HEADS, 1)) * head_mask               # (G, E)

    # single scores matmul for all batches & heads, contracting trailing dims
    # (equivalent to pl.dot(q_all, k, trans_b=True): no materialized K transpose)
    s = lax.dot_general(q_all, k, (((1,), (1,)), ((), ())),
                        preferred_element_type=jnp.float32) + batch_bias  # (G, BT)
    s = s - jnp.max(s, axis=-1, keepdims=True)
    p = jnp.exp(s)
    p = p * pl.reciprocal(jnp.sum(p, axis=-1, keepdims=True), approx=True)

    # single context matmul, then fold per-head row blocks back with a constant matmul
    ctx_full = jnp.dot(p, v, preferred_element_type=jnp.float32)        # (G, E)
    ctx = jnp.dot(fold, ctx_full * head_mask,
                  preferred_element_type=jnp.float32)                   # (B*S, E)

    o_ref[...] = jnp.dot(ctx, w_out_t,
                         preferred_element_type=jnp.float32) + b_out    # (B*S, E)


# ------------------------------ wrapper ---------------------------------------
def _build_constants():
    """Packed (2G + B*S, E) constant array: head mask, batch score bias, fold matrix."""
    E, D, S, H, T = EMBED_SIZE, HEAD_DIM, SUMMARY_TOKENS, N_HEADS, SEQ_LEN

    g = jnp.arange(_G)
    head_of_row = (g % (H * S)) // S
    batch_of_row = g // (H * S)
    head_of_col = jnp.arange(E) // D
    head_mask = (head_of_row[:, None] == head_of_col[None, :]).astype(jnp.float32)   # (G, E)

    batch_of_key = jnp.arange(_BT) // T
    batch_bias = jnp.where(batch_of_row[:, None] == batch_of_key[None, :],
                           0.0, -1e9).astype(jnp.float32)                            # (G, BT)
    batch_bias = jnp.pad(batch_bias, ((0, 0), (0, E - _BT)))                         # (G, E)

    o = jnp.arange(_OUT_ROWS)
    fold = ((o[:, None] // S == batch_of_row[None, :]) &
            ((o % S)[:, None] == (g % S)[None, :])).astype(jnp.float32)              # (B*S, G)

    return jnp.concatenate([head_mask, batch_bias, fold], axis=0)                    # (72, E)


def tiny_summarizer_forward(x, summary_tokens, in_proj_w, in_proj_b,
                            out_proj_w, out_proj_b):
    """x: (B, T, E) float32 -> (B, S, E) float32."""
    B, T, E = x.shape
    S = summary_tokens.shape[1]

    # Wrapper-side layout prep (one-time XLA work, fused/amortized, constant-folded):
    inp = jnp.concatenate([x.reshape(B * T, E), summary_tokens.reshape(S, E)], axis=0)
    inp = jnp.pad(inp, ((0, _PAD_ROWS - (B * T + S)), (0, 0)))                  # (24, E)
    w_in_packed = jnp.concatenate([in_proj_w.T, in_proj_b.reshape(1, 3 * E)], 0)   # (E+1, 3E)
    w_out_packed = jnp.concatenate([out_proj_w.T, out_proj_b.reshape(1, E)], 0)    # (E+1, E)
    consts = _build_constants()                                                  # (72, E)

    out_flat = pl.pallas_call(
        mha_kernel,
        out_shape=jax.ShapeDtypeStruct((_OUT_ROWS, E), jnp.float32),
        grid=(1,),
        in_specs=[
            pl.BlockSpec((_PAD_ROWS, E), lambda i: (0, 0)),          # [x ; summary], padded
            pl.BlockSpec((E + 1, 3 * E), lambda i: (0, 0)),          # [W_in^T ; b_in]
            pl.BlockSpec((E + 1, E), lambda i: (0, 0)),              # [W_out^T ; b_out]
            pl.BlockSpec((2 * _G + _OUT_ROWS, E), lambda i: (0, 0)), # packed constants
        ],
        out_specs=pl.BlockSpec((_OUT_ROWS, E), lambda i: (0, 0)),
    )(inp, w_in_packed, w_out_packed, consts)

    return out_flat.reshape(B, S, E)


# ------------------------- pure-JAX reference check --------------------------
def reference_forward(x, summary_tokens, in_proj_w, in_proj_b,
                      out_proj_w, out_proj_b):
    B, T, E = x.shape
    q_in = jnp.broadcast_to(summary_tokens, (B,) + summary_tokens.shape[1:])
    wq, wk, wv = in_proj_w[:E], in_proj_w[E:2 * E], in_proj_w[2 * E:]
    bq, bk, bv = in_proj_b[:E], in_proj_b[E:2 * E], in_proj_b[2 * E:]
    q = jnp.einsum("bse,fe->bsf", q_in, wq) + bq
    k = jnp.einsum("bte,fe->btf", x, wk) + bk
    v = jnp.einsum("bte,fe->btf", x, wv) + bv
    S = q.shape[1]
    q = q.reshape(B, S, N_HEADS, HEAD_DIM).transpose(0, 2, 1, 3)
    k = k.reshape(B, T, N_HEADS, HEAD_DIM).transpose(0, 2, 1, 3)
    v = v.reshape(B, T, N_HEADS, HEAD_DIM).transpose(0, 2, 1, 3)
    s = jnp.einsum("bhsd,bhtd->bhst", q, k) / math.sqrt(HEAD_DIM)
    p = jax.nn.softmax(s, axis=-1)
    o = jnp.einsum("bhst,bhtd->bhsd", p, v)
    o = o.transpose(0, 2, 1, 3).reshape(B, S, EMBED_SIZE)
    return jnp.einsum("bse,fe->bsf", o, out_proj_w) + out_proj_b


# ---------------------------------- main -------------------------------------
if __name__ == "__main__":
    key = jax.random.PRNGKey(0)
    k_x, k_tok, k_win, k_bin, k_wout, k_bout = jax.random.split(key, 6)

    # deterministic synthetic parameters (shapes from __init__ / nn.MultiheadAttention)
    x = jax.random.normal(k_x, (BATCH, SEQ_LEN, EMBED_SIZE), jnp.float32)
    summary_tokens = jax.random.normal(k_tok, (1, SUMMARY_TOKENS, EMBED_SIZE), jnp.float32)
    in_proj_w = jax.random.normal(k_win, (3 * EMBED_SIZE, EMBED_SIZE), jnp.float32) * 0.1
    in_proj_b = jax.random.normal(k_bin, (3 * EMBED_SIZE,), jnp.float32) * 0.1
    out_proj_w = jax.random.normal(k_wout, (EMBED_SIZE, EMBED_SIZE), jnp.float32) * 0.1
    out_proj_b = jax.random.normal(k_bout, (EMBED_SIZE,), jnp.float32) * 0.1

    fwd = jax.jit(tiny_summarizer_forward)
    out = fwd(x, summary_tokens, in_proj_w, in_proj_b, out_proj_w, out_proj_b)
    out = jax.block_until_ready(out)

    ref = reference_forward(x, summary_tokens, in_proj_w, in_proj_b,
                            out_proj_w, out_proj_b)
    assert out.shape == (BATCH, SUMMARY_TOKENS, EMBED_SIZE)
    # Tolerance 1e-3 because of the approx (EUP vrcp) softmax reciprocal;
    # observed error is well below that.
    assert jnp.allclose(out, ref, atol=1e-3, rtol=1e-3), "mismatch vs reference"

    print("KERNEL_OK")
</pallas_src>

<mosaic_0001>
module attributes {stable_mosaic.version = 11 : i64} {
  func.func @mha_kernel(%arg0: i32, %arg1: memref<24x32xf32, #tpu.memory_space<vmem>>, %arg2: memref<33x96xf32, #tpu.memory_space<vmem>>, %arg3: memref<33x32xf32, #tpu.memory_space<vmem>>, %arg4: memref<72x32xf32, #tpu.memory_space<vmem>>, %arg5: memref<8x32xf32, #tpu.memory_space<vmem>>) attributes {dimension_semantics = [#tpu.dimension_semantics<arbitrary>], iteration_bounds = array<i64: 1>, scalar_prefetch = 0 : i64, scratch_operands = 0 : i64, tpu.core_type = #tpu.core_type<tc>, window_params = [{pipeline_mode = #tpu.pipeline_mode<synchronous>, transform_indices = @transform_0, window_bounds = array<i64: 24, 32>}, {pipeline_mode = #tpu.pipeline_mode<synchronous>, transform_indices = @transform_1, window_bounds = array<i64: 33, 96>}, {pipeline_mode = #tpu.pipeline_mode<synchronous>, transform_indices = @transform_2, window_bounds = array<i64: 33, 32>}, {pipeline_mode = #tpu.pipeline_mode<synchronous>, transform_indices = @transform_3, window_bounds = array<i64: 72, 32>}, {pipeline_mode = #tpu.pipeline_mode<synchronous>, transform_indices = @transform_4, window_bounds = array<i64: 8, 32>}]} {
    %c0 = arith.constant 0 : index
    %c0_0 = arith.constant 0 : index
    %0 = vector.load %arg2[%c0, %c0_0] : memref<33x96xf32, #tpu.memory_space<vmem>>, vector<32x96xf32>
    %c32 = arith.constant 32 : index
    %c0_1 = arith.constant 0 : index
    %1 = vector.load %arg2[%c32, %c0_1] : memref<33x96xf32, #tpu.memory_space<vmem>>, vector<1x96xf32>
    %c0_2 = arith.constant 0 : index
    %c0_3 = arith.constant 0 : index
    %2 = vector.load %arg3[%c0_2, %c0_3] : memref<33x32xf32, #tpu.memory_space<vmem>>, vector<32x32xf32>
    %c32_4 = arith.constant 32 : index
    %c0_5 = arith.constant 0 : index
    %3 = vector.load %arg3[%c32_4, %c0_5] : memref<33x32xf32, #tpu.memory_space<vmem>>, vector<1x32xf32>
    %c0_6 = arith.constant 0 : index
    %c0_7 = arith.constant 0 : index
    %4 = vector.load %arg4[%c0_6, %c0_7] : memref<72x32xf32, #tpu.memory_space<vmem>>, vector<32x32xf32>
    %c32_8 = arith.constant 32 : index
    %c0_9 = arith.constant 0 : index
    %5 = vector.load %arg4[%c32_8, %c0_9] : memref<72x32xf32, #tpu.memory_space<vmem>>, vector<32x16xf32>
    %c64 = arith.constant 64 : index
    %c0_10 = arith.constant 0 : index
    %6 = vector.load %arg4[%c64, %c0_10] : memref<72x32xf32, #tpu.memory_space<vmem>>, vector<8x32xf32>
    %c0_11 = arith.constant 0 : index
    %c0_12 = arith.constant 0 : index
    %7 = vector.load %arg1[%c0_11, %c0_12] : memref<24x32xf32, #tpu.memory_space<vmem>>, vector<24x32xf32>
    %cst = arith.constant dense<0.000000e+00> : vector<24x96xf32>
    %8 = tpu.matmul %7, %0, %cst {dimension_numbers = #tpu.dot_dimension_numbers<[1], [0], [0], [1], [0, 0, 1, 1], [], []>} : vector<24x32xf32>, vector<32x96xf32>, vector<24x96xf32> -> vector<24x96xf32>
    %9 = vector.broadcast %1 : vector<1x96xf32> to vector<24x96xf32>
    %10 = arith.addf %8, %9 : vector<24x96xf32>
    %11 = vector.extract_strided_slice %10 {offsets = [0, 32], sizes = [16, 32], strides = [1, 1]} : vector<24x96xf32> to vector<16x32xf32>
    %12 = vector.extract_strided_slice %10 {offsets = [0, 64], sizes = [16, 32], strides = [1, 1]} : vector<24x96xf32> to vector<16x32xf32>
    %13 = vector.extract_strided_slice %10 {offsets = [16, 0], sizes = [4, 32], strides = [1, 1]} : vector<24x96xf32> to vector<4x32xf32>
    %cst_13 = arith.constant 0.353553385 : f32
    %14 = vector.broadcast %cst_13 : f32 to vector<4x32xf32>
    %15 = arith.mulf %13, %14 : vector<4x32xf32>
    %16 = tpu.concatenate %15, %15, %15, %15, %15, %15, %15, %15 in 0 : vector<4x32xf32>, vector<4x32xf32>, vector<4x32xf32>, vector<4x32xf32>, vector<4x32xf32>, vector<4x32xf32>, vector<4x32xf32>, vector<4x32xf32> -> vector<32x32xf32>
    %17 = arith.mulf %16, %4 : vector<32x32xf32>
    %cst_14 = arith.constant dense<0.000000e+00> : vector<32x16xf32>
    %18 = tpu.matmul %17, %11, %cst_14 {dimension_numbers = #tpu.dot_dimension_numbers<[1], [1], [0], [0], [0, 0, 1, 0], [], []>} : vector<32x32xf32>, vector<16x32xf32>, vector<32x16xf32> -> vector<32x16xf32>
    %19 = arith.addf %18, %5 : vector<32x16xf32>
    %cst_15 = arith.constant dense<0xFF800000> : vector<32xf32>
    %20 = vector.multi_reduction <maximumf>, %19, %cst_15 [1] : vector<32x16xf32> to vector<32xf32>
    %21 = vector.shape_cast %20 : vector<32xf32> to vector<32x1xf32>
    %22 = vector.broadcast %21 : vector<32x1xf32> to vector<32x16xf32>
    %23 = arith.subf %19, %22 : vector<32x16xf32>
    %24 = math.exp %23 : vector<32x16xf32>
    %cst_16 = arith.constant dense<0.000000e+00> : vector<32xf32>
    %25 = vector.multi_reduction <add>, %24, %cst_16 [1] : vector<32x16xf32> to vector<32xf32>
    %26 = vector.shape_cast %25 : vector<32xf32> to vector<32x1xf32>
    %27 = tpu.reciprocal %26 {approx = true} : vector<32x1xf32> -> vector<32x1xf32>
    %28 = vector.broadcast %27 : vector<32x1xf32> to vector<32x16xf32>
    %29 = arith.mulf %24, %28 : vector<32x16xf32>
    %cst_17 = arith.constant dense<0.000000e+00> : vector<32x32xf32>
    %30 = tpu.matmul %29, %12, %cst_17 {dimension_numbers = #tpu.dot_dimension_numbers<[1], [0], [0], [1], [0, 0, 1, 1], [], []>} : vector<32x16xf32>, vector<16x32xf32>, vector<32x32xf32> -> vector<32x32xf32>
    %31 = arith.mulf %30, %4 : vector<32x32xf32>
    %cst_18 = arith.constant dense<0.000000e+00> : vector<8x32xf32>
    %32 = tpu.matmul %6, %31, %cst_18 {dimension_numbers = #tpu.dot_dimension_numbers<[1], [0], [0], [1], [0, 0, 1, 1], [], []>} : vector<8x32xf32>, vector<32x32xf32>, vector<8x32xf32> -> vector<8x32xf32>
    %cst_19 = arith.constant dense<0.000000e+00> : vector<8x32xf32>
    %33 = tpu.matmul %32, %2, %cst_19 {dimension_numbers = #tpu.dot_dimension_numbers<[1], [0], [0], [1], [0, 0, 1, 1], [], []>} : vector<8x32xf32>, vector<32x32xf32>, vector<8x32xf32> -> vector<8x32xf32>
    %34 = vector.broadcast %3 : vector<1x32xf32> to vector<8x32xf32>
    %35 = arith.addf %33, %34 : vector<8x32xf32>
    %c0_20 = arith.constant 0 : index
    %c0_21 = arith.constant 0 : index
    %36 = vector.load %arg5[%c0_20, %c0_21] : memref<8x32xf32, #tpu.memory_space<vmem>>, vector<8x32xf32>
    tpu.vector_store %arg5[%c0_20, %c0_21], %35 {strides = array<i32>} : memref<8x32xf32, #tpu.memory_space<vmem>>, vector<8x32xf32>,
    return
  }
  func.func @transform_0(%arg0: i32) -> (i32, i32) {
    %c0_i32 = arith.constant 0 : i32
    %c0_i32_0 = arith.constant 0 : i32
    %c0_i32_1 = arith.constant 0 : i32
    return %c0_i32, %c0_i32_0 : i32, i32
  }
  func.func @transform_1(%arg0: i32) -> (i32, i32) {
    %c0_i32 = arith.constant 0 : i32
    %c0_i32_0 = arith.constant 0 : i32
    %c0_i32_1 = arith.constant 0 : i32
    return %c0_i32, %c0_i32_0 : i32, i32
  }
  func.func @transform_2(%arg0: i32) -> (i32, i32) {
    %c0_i32 = arith.constant 0 : i32
    %c0_i32_0 = arith.constant 0 : i32
    %c0_i32_1 = arith.constant 0 : i32
    return %c0_i32, %c0_i32_0 : i32, i32
  }
  func.func @transform_3(%arg0: i32) -> (i32, i32) {
    %c0_i32 = arith.constant 0 : i32
    %c0_i32_0 = arith.constant 0 : i32
    %c0_i32_1 = arith.constant 0 : i32
    return %c0_i32, %c0_i32_0 : i32, i32
  }
  func.func @transform_4(%arg0: i32) -> (i32, i32) {
    %c0_i32 = arith.constant 0 : i32
    %c0_i32_0 = arith.constant 0 : i32
    %c0_i32_1 = arith.constant 0 : i32
    return %c0_i32, %c0_i32_0 : i32, i32
  }
}

</mosaic_0001>

<llo_original>
// kernel: tiny_summarizer_forward.1
$region0: #{tiny_summarizer_forward.1}
  #allocation0 [shape = 'u32[]', space=smem, size = 0x4, offset = 0x4, fixed_abs, tag = 'smem constant byte address 0x4 - core index']
  #allocation1 [shape = 'u32[72,128]{1,0:T(1,128)}', space=vmem, size = 0x9000, scoped, tag = 'internal scratch']
  %s0 = inlined_call_operand.vmem [shape: f32[24,32], index: 0, kind: input, shape index: {}]
  %s1 = inlined_call_operand.vmem [shape: f32[33,96], index: 1, kind: input, shape index: {}]
  %s2 = inlined_call_operand.vmem [shape: f32[33,32], index: 2, kind: input, shape index: {}]
  %s3 = inlined_call_operand.vmem [shape: f32[72,32], index: 3, kind: input, shape index: {}]
  %s4 = inlined_call_operand.hbm [shape: f32[8,32], index: 4, kind: output, shape index: {}]
  %s5 = sld [smem:[#allocation0]]
  $region26: #{tiny_summarizer_forward.1} parent=0
    _
  %s7 = ssub.s32 1, %s5
  %s8 = scalar_select 0, %s7, %s5
  $region1: #{tiny_summarizer_forward.1} parent=0
    #allocation2 [shape = 'u8[4096]{0}', space=vmem, size = 0x1000, scoped, tag = 'output window, operand 0, single buffered']
    #allocation3 [shape = 's32[1]{0}', space=sflag, size = 0x4, scoped, tag = 'scoped memory for tiny_summarizer_forward.1']
    %9 = vsyncpa [#allocation3], 0
    // Predicated region
    $region2: #{tiny_summarizer_forward.1} parent=1 // pred_check
      _
    $region3: #{tiny_summarizer_forward.1} parent=1 // pred_check_branch
      %11 = sbr.rel (0) target = $region5
    $region4: #{tiny_summarizer_forward.1} parent=1 // pred_region
      _
    $region5: #{tiny_summarizer_forward.1} parent=1 // pred_fallthru
      _
    // Predicated region
    $region6: #{tiny_summarizer_forward.1} parent=1 // pred_check
      _
    $region7: #{tiny_summarizer_forward.1} parent=1 // pred_check_branch
      %13 = sbr.rel (0) target = $region9
    $region8: #{tiny_summarizer_forward.1} parent=1 // pred_region
      _
    $region9: #{tiny_summarizer_forward.1} parent=1 // pred_fallthru
      _
    // Predicated region
    $region10: #{tiny_summarizer_forward.1} parent=1 // pred_check
      _
    $region11: #{tiny_summarizer_forward.1} parent=1 // pred_check_branch
      %15 = sbr.rel (0) target = $region13
    $region12: #{tiny_summarizer_forward.1} parent=1 // pred_region
      _
    $region13: #{tiny_summarizer_forward.1} parent=1 // pred_fallthru
      _
    // Predicated region
    $region14: #{tiny_summarizer_forward.1} parent=1 // pred_check
      _
    $region15: #{tiny_summarizer_forward.1} parent=1 // pred_check_branch
      %17 = sbr.rel (0) target = $region17
    $region16: #{tiny_summarizer_forward.1} parent=1 // pred_region
      _
    $region17: #{tiny_summarizer_forward.1} parent=1 // pred_fallthru
      _
    %v18 = vld [vmem:[%s1] sm:$0xff]
    %v19 = vld [vmem:[%s1 + $0x8] sm:$0xff]
    %v20 = vld [vmem:[%s1 + $0x10] sm:$0xff]
    %v21 = vld [vmem:[%s1 + $0x18] sm:$0xff]
    %v22 = vld [vmem:[%s1 + $0x20] sm:$0x1]
    %v23 = vld [vmem:[%s2] sm:$0xff]
    %v24 = vld [vmem:[%s2 + $0x8] sm:$0xff]
    %v25 = vld [vmem:[%s2 + $0x10] sm:$0xff]
    %v26 = vld [vmem:[%s2 + $0x18] sm:$0xff]
    %v27 = vld [vmem:[%s2 + $0x20] sm:$0x1]
    %v28 = vld [vmem:[%s3] sm:$0xff]
    %v29 = vld [vmem:[%s3 + $0x8] sm:$0xff]
    %v30 = vld [vmem:[%s3 + $0x10] sm:$0xff]
    %v31 = vld [vmem:[%s3 + $0x18] sm:$0xff]
    %v32 = vld [vmem:[%s3 + $0x20] sm:$0xff]
    %v33 = vld [vmem:[%s3 + $0x28] sm:$0xff]
    %v34 = vld [vmem:[%s3 + $0x30] sm:$0xff]
    %v35 = vld [vmem:[%s3 + $0x38] sm:$0xff]
    %v36 = vld [vmem:[%s3 + $0x40] sm:$0xff]
    %v37 = vld [vmem:[%s0] sm:$0xff]
    %v38 = vld [vmem:[%s0 + $0x8] sm:$0xff]
    %v39 = vld [vmem:[%s0 + $0x10] sm:$0xff]
    %v40 = vperm.slane %v22, 0
    %vm41 = vcmask 261120
    %v43 = vsel %vm41, %v37, 0
    %v46 = vsel %vm41, %v38, 0
    %v49 = vsel %vm41, %v39, 0
    %51 = vmatpush.msra.mxu0 0.0
    %52 = vmatpush.msra.mxu0 0.0
    %53 = vmatpush.msra.mxu0 0.0
    %54 = vmatpush.msra.mxu0 0.0
    %55 = vmatpush.msra.mxu0 0.0
    %56 = vmatpush.msra.mxu0 0.0
    %57 = vmatpush.msra.mxu0 0.0
    %58 = vmatpush.msra.mxu0 0.0
    %59 = vmatpush.msra.mxu0 0.0
    %60 = vmatpush.msra.mxu0 0.0
    %61 = vmatpush.msra.mxu0 0.0
    %62 = vmatpush.msra.mxu0 0.0
    %63 = vmatpush.msra.mxu0 %v21
    %64 = vmatpush.msra.mxu0 %v20
    %65 = vmatpush.msra.mxu0 %v19
    %66 = vmatpush.msra.mxu0 %v18
    %67 = vmatmul.f32.gmra.mxu0 %v43
    %v68 = vpop.f32.mrf.mxu0
    %v69 = vadd.f32 %v40, %v68
    %70 = vmatmul.f32.gmra.mxu0 %v46
    %v71 = vpop.f32.mrf.mxu0
    %v72 = vadd.f32 %v40, %v71
    %73 = vmatmul.f32.gmra.mxu0 %v49
    %v74 = vpop.f32.mrf.mxu0
    %v75 = vadd.f32 %v40, %v74
    %76 = vdwg.mxu0
    %v77 = vmul.f32 %v75, 0.35355338
    %v79 = vrot.slane %v77, 4
    %vm81 = vcmask 1043456
    %v82 = vsel %vm81, %v77, %v79
    %v83 = vmul.f32 %v82, %v28
    %v84 = vmul.f32 %v82, %v29
    %v85 = vmul.f32 %v82, %v30
    %v86 = vmul.f32 %v82, %v31
    %89 = vrot.lane.b32.xlu0 %v69, 96
    %v90 = vpop.permute.xlu0 %89
    %91 = vrot.lane.b32.xlu0 %v72, 96
    %v92 = vpop.permute.xlu0 %91
    %v94 = vsel %vm41, %v83, 0
    %v97 = vsel %vm41, %v84, 0
    %v100 = vsel %vm41, %v85, 0
    %v103 = vsel %vm41, %v86, 0
    %v105 = vsel %vm41, %v90, 0
    %v107 = vsel %vm41, %v92, 0
    %109 = vmatpush.xpose.msra.mxu0 0.0
    %110 = vmatpush.xpose.msra.mxu0 0.0
    %111 = vmatpush.xpose.msra.mxu0 0.0
    %112 = vmatpush.xpose.msra.mxu0 0.0
    %113 = vmatpush.xpose.msra.mxu0 0.0
    %114 = vmatpush.xpose.msra.mxu0 0.0
    %115 = vmatpush.xpose.msra.mxu0 0.0
    %116 = vmatpush.xpose.msra.mxu0 0.0
    %117 = vmatpush.xpose.msra.mxu0 0.0
    %118 = vmatpush.xpose.msra.mxu0 0.0
    %119 = vmatpush.xpose.msra.mxu0 0.0
    %120 = vmatpush.xpose.msra.mxu0 0.0
    %121 = vmatpush.xpose.msra.mxu0 0.0
    %122 = vmatpush.xpose.msra.mxu0 0.0
    %123 = vmatpush.xpose.msra.mxu0 %v107
    %124 = vmatpush.xpose.msra.mxu0 %v105
    %125 = vmatmul.f32.gmra.mxu0 %v94
    %v126 = vpop.f32.mrf.mxu0
    %v127 = vadd.f32 %v32, %v126
    %128 = vmatmul.f32.gmra.mxu0 %v97
    %v129 = vpop.f32.mrf.mxu0
    %v130 = vadd.f32 %v33, %v129
    %131 = vmatmul.f32.gmra.mxu0 %v100
    %v132 = vpop.f32.mrf.mxu0
    %v133 = vadd.f32 %v34, %v132
    %134 = vmatmul.f32.gmra.mxu0 %v103
    %v135 = vpop.f32.mrf.mxu0
    %v136 = vadd.f32 %v35, %v135
    %137 = vdwg.mxu0
    %vm138 = vcmask 130048
    %v139 = vsel %vm138, %v127, -inf
    %140 = vmax.xlane.f32.xlu0 %v139
    %v141 = vpop.xlane.xlu0 %140
    %v142 = vsel %vm138, %v130, -inf
    %143 = vmax.xlane.f32.xlu0 %v142
    %v144 = vpop.xlane.xlu0 %143
    %v145 = vsel %vm138, %v133, -inf
    %146 = vmax.xlane.f32.xlu0 %v145
    %v147 = vpop.xlane.xlu0 %146
    %v148 = vsel %vm138, %v136, -inf
    %149 = vmax.xlane.f32.xlu0 %v148
    %v150 = vpop.xlane.xlu0 %149
    %v151 = vsub.f32 %v127, %v141
    %v152 = vsub.f32 %v130, %v144
    %v153 = vsub.f32 %v133, %v147
    %v154 = vsub.f32 %v136, %v150
    %v155 = vmul.f32 %v151, 1.442695
    %v156 = vpow.pop %v155
    %v157 = vmul.f32 %v152, 1.442695
    %v158 = vpow.pop %v157
    %v159 = vmul.f32 %v153, 1.442695
    %v160 = vpow.pop %v159
    %v161 = vmul.f32 %v154, 1.442695
    %v162 = vpow.pop %v161
    %v163 = vsel %vm138, %v156, 0.0
    %164 = vadd.xlane.f32.xlu0 %v163
    %v165 = vpop.xlane.xlu0 %164
    %v166 = vsel %vm138, %v158, 0.0
    %167 = vadd.xlane.f32.xlu0 %v166
    %v168 = vpop.xlane.xlu0 %167
    %v169 = vsel %vm138, %v160, 0.0
    %170 = vadd.xlane.f32.xlu0 %v169
    %v171 = vpop.xlane.xlu0 %170
    %v172 = vsel %vm138, %v162, 0.0
    %173 = vadd.xlane.f32.xlu0 %v172
    %v174 = vpop.xlane.xlu0 %173
    %v175 = vrcp.pop %v165
    %v176 = vrcp.pop %v168
    %v177 = vrcp.pop %v171
    %v178 = vrcp.pop %v174
    %v179 = vmul.f32 %v156, %v175
    %v180 = vmul.f32 %v158, %v176
    %v181 = vmul.f32 %v160, %v177
    %v182 = vmul.f32 %v162, %v178
    %183 = vrot.lane.b32.xlu0 %v69, 64
    %v184 = vpop.permute.xlu0 %183
    %185 = vrot.lane.b32.xlu0 %v72, 64
    %v186 = vpop.permute.xlu0 %185
    %v190 = vsel %vm138, %v179, 0
    %v193 = vsel %vm138, %v180, 0
    %v196 = vsel %vm138, %v181, 0
    %v199 = vsel %vm138, %v182, 0
    %201 = vmatpush.msra.mxu0 0.0
    %202 = vmatpush.msra.mxu0 0.0
    %203 = vmatpush.msra.mxu0 0.0
    %204 = vmatpush.msra.mxu0 0.0
    %205 = vmatpush.msra.mxu0 0.0
    %206 = vmatpush.msra.mxu0 0.0
    %207 = vmatpush.msra.mxu0 0.0
    %208 = vmatpush.msra.mxu0 0.0
    %209 = vmatpush.msra.mxu0 0.0
    %210 = vmatpush.msra.mxu0 0.0
    %211 = vmatpush.msra.mxu0 0.0
    %212 = vmatpush.msra.mxu0 0.0
    %213 = vmatpush.msra.mxu0 0.0
    %214 = vmatpush.msra.mxu0 0.0
    %215 = vmatpush.msra.mxu0 %v186
    %216 = vmatpush.msra.mxu0 %v184
    %217 = vmatmul.f32.gmra.mxu0 %v190
    %v218 = vpop.f32.mrf.mxu0
    %v219 = vadd.f32 0.0, %v218
    %220 = vmatmul.f32.gmra.mxu0 %v193
    %v221 = vpop.f32.mrf.mxu0
    %v222 = vadd.f32 0.0, %v221
    %223 = vmatmul.f32.gmra.mxu0 %v196
    %v224 = vpop.f32.mrf.mxu0
    %v225 = vadd.f32 0.0, %v224
    %226 = vmatmul.f32.gmra.mxu0 %v199
    %v227 = vpop.f32.mrf.mxu0
    %v228 = vadd.f32 0.0, %v227
    %229 = vdwg.mxu0
    %v230 = vmul.f32 %v219, %v28
    %v231 = vmul.f32 %v222, %v29
    %v232 = vmul.f32 %v225, %v30
    %v233 = vmul.f32 %v228, %v31
    %v235 = vsel %vm41, %v36, 0
    %237 = vmatpush.msra.mxu0 0.0
    %238 = vmatpush.msra.mxu0 0.0
    %239 = vmatpush.msra.mxu0 0.0
    %240 = vmatpush.msra.mxu0 0.0
    %241 = vmatpush.msra.mxu0 0.0
    %242 = vmatpush.msra.mxu0 0.0
    %243 = vmatpush.msra.mxu0 0.0
    %244 = vmatpush.msra.mxu0 0.0
    %245 = vmatpush.msra.mxu0 0.0
    %246 = vmatpush.msra.mxu0 0.0
    %247 = vmatpush.msra.mxu0 0.0
    %248 = vmatpush.msra.mxu0 0.0
    %249 = vmatpush.msra.mxu0 %v233
    %250 = vmatpush.msra.mxu0 %v232
    %251 = vmatpush.msra.mxu0 %v231
    %252 = vmatpush.msra.mxu0 %v230
    %253 = vmatmul.f32.gmra.mxu0 %v235
    %v254 = vpop.f32.mrf.mxu0
    %v255 = vadd.f32 0.0, %v254
    %256 = vdwg.mxu0
    %v257 = vperm.slane %v27, 0
    %v259 = vsel %vm41, %v255, 0
    %261 = vmatpush.msra.mxu0 0.0
    %262 = vmatpush.msra.mxu0 0.0
    %263 = vmatpush.msra.mxu0 0.0
    %264 = vmatpush.msra.mxu0 0.0
    %265 = vmatpush.msra.mxu0 0.0
    %266 = vmatpush.msra.mxu0 0.0
    %267 = vmatpush.msra.mxu0 0.0
    %268 = vmatpush.msra.mxu0 0.0
    %269 = vmatpush.msra.mxu0 0.0
    %270 = vmatpush.msra.mxu0 0.0
    %271 = vmatpush.msra.mxu0 0.0
    %272 = vmatpush.msra.mxu0 0.0
    %273 = vmatpush.msra.mxu0 %v26
    %274 = vmatpush.msra.mxu0 %v25
    %275 = vmatpush.msra.mxu0 %v24
    %276 = vmatpush.msra.mxu0 %v23
    %277 = vmatmul.f32.gmra.mxu0 %v259
    %v278 = vpop.f32.mrf.mxu0
    %v279 = vadd.f32 %v257, %v278
    %280 = vdwg.mxu0
    %281 = vst.msk [vmem:[#allocation2] sm:$0xff] %vm41, %v279
    // Predicated region
    $region18: #{tiny_summarizer_forward.1} parent=1 // pred_check
      _
    $region19: #{tiny_summarizer_forward.1} parent=1 // pred_check_branch
      %283 = sbr.rel (0) target = $region21
    $region20: #{tiny_summarizer_forward.1} parent=1 // pred_region
      %285 = vsyncadd [#allocation3], 0
      %s287 = sshll.u32 [#allocation2], 4
      %s288 = int_to_ptr.vmem [resolvable:$true] %s287
      %s289 = sshll.u32 %s4, 4
      %s290 = int_to_ptr.hbm [resolvable:$true] %s289
      %292 = dma.vmem_to_hbm [thread:$0]  %s288, 128, %s290, [#allocation3]
    $region21: #{tiny_summarizer_forward.1} parent=1 // pred_fallthru
      _
    // Predicated region
    $region22: #{tiny_summarizer_forward.1} parent=1 // pred_check
      _
    $region23: #{tiny_summarizer_forward.1} parent=1 // pred_check_branch
      %294 = sbr.rel (0) target = $region25
    $region24: #{tiny_summarizer_forward.1} parent=1 // pred_region
      %296 = dma.done [#allocation3], 128
    $region25: #{tiny_summarizer_forward.1} parent=1 // pred_fallthru
      _
    %297 = vsyncpa [#allocation3], 1

</llo_original>
